<compile_context>
chip_gen: v5e
topology: v5e:2x2
jax: 0.10.0
libtpu: 0.0.40
codegen_flags: <defaults>
</compile_context>

<pallas_src>
import functools

import jax
import jax.numpy as jnp
from jax import lax
from jax.experimental import pallas as pl
from jax.experimental.pallas import tpu as pltpu

_LANE = 128


def _lstm_sentiment_kernel(x_ref, wih_ref, whh_ref, b_ref, wout_ref, bout_ref,
                           out_ref, xw_ref, *, hidden_dim, seq_len, batch):
    H, T, B = hidden_dim, seq_len, batch

    # ---- Prologue: input projection for ALL timesteps as one MXU matmul ----
    # x_ref is (T*B, E) bf16; result (T*B, 4H) f32 kept in VMEM scratch.
    xw_ref[...] = (jnp.dot(x_ref[...], wih_ref[...],
                           preferred_element_type=jnp.float32) + b_ref[...])

    whh = whh_ref[...]  # bf16 (H, 4H), resident in VMEM for the whole loop

    # ---- Serial recurrence: only h @ W_hh is on the critical path ----
    def step(t, carry):
        h, c = carry                                   # h bf16 (B,H), c f32 (B,H)
        row = pl.multiple_of(t * B, 8)                 # aligned sublane offset
        gates = xw_ref[pl.ds(row, B), :] + jnp.dot(
            h, whh, preferred_element_type=jnp.float32)
        # Full-width activations: one sigmoid pass + one tanh pass over the
        # whole (B, 4H) tile, then slice. PyTorch gate order [i, f, g, o].
        sig = jax.nn.sigmoid(gates)
        tah = jnp.tanh(gates)
        i_g = sig[:, 0 * H:1 * H]
        f_g = sig[:, 1 * H:2 * H]
        g_g = tah[:, 2 * H:3 * H]
        o_g = sig[:, 3 * H:4 * H]
        c_new = f_g * c + i_g * g_g
        h_new = (o_g * jnp.tanh(c_new)).astype(jnp.bfloat16)
        return h_new, c_new

    h0 = jnp.zeros((B, H), jnp.bfloat16)  # matches init_hidden() zeros
    c0 = jnp.zeros((B, H), jnp.float32)
    h_last, _ = lax.fori_loop(0, T, step, (h0, c0), unroll=min(T, 8))

    # ---- Classifier head + log_softmax on the last hidden state ----
    # wout/bout are lane-padded to 128; padded bias columns are -1e30 so they
    # contribute exp(...) == 0 to the softmax denominator.
    y = jnp.dot(h_last, wout_ref[...],
                preferred_element_type=jnp.float32) + bout_ref[...]
    z = y - jnp.max(y, axis=-1, keepdims=True)
    out_ref[...] = z - jnp.log(jnp.sum(jnp.exp(z), axis=-1, keepdims=True))


def lstm_sentiment_forward(sentence, params):
    """sentence: (seq_len, batch) int32 token ids.  Returns (batch, label) log-probs."""
    emb = params["embedding"]                         # (vocab, E) f32
    w_ih = params["w_ih"].astype(jnp.bfloat16)        # (E, 4H)
    w_hh = params["w_hh"].astype(jnp.bfloat16)        # (H, 4H)
    w_out = params["w_out"].astype(jnp.bfloat16)      # (H, label)
    b = params["b"]                                   # (1, 4H) f32
    b_out = params["b_out"]                           # (1, label) f32

    seq_len, batch = sentence.shape
    embed = emb.shape[1]
    hidden = params["w_hh"].shape[0]
    label = params["w_out"].shape[1]

    # Embedding lookup is glue (gather) done in plain JAX; feed MXU in bf16.
    x = emb[sentence].astype(jnp.bfloat16)            # (T, B, E)

    # Pad batch up to the 8-sublane width (free; padded rows sliced off below).
    b_pad = -(-batch // 8) * 8
    if b_pad != batch:
        x = jnp.pad(x, ((0, 0), (0, b_pad - batch), (0, 0)))
    x2d = x.reshape(seq_len * b_pad, embed)           # (T*B_pad, E)

    # Lane-dense classifier head: pad label dim to a multiple of 128.
    label_pad = -(-label // _LANE) * _LANE
    w_out_p = jnp.zeros((hidden, label_pad), jnp.bfloat16).at[:, :label].set(w_out)
    b_out_p = jnp.full((1, label_pad), -1e30, jnp.float32).at[:, :label].set(b_out)

    kernel = functools.partial(_lstm_sentiment_kernel,
                               hidden_dim=hidden, seq_len=seq_len, batch=b_pad)

    # Whole-kernel VMEM residency (no grid, so each input lives in VMEM once).
    vmem_need = (
        x2d.size * 2 + w_ih.size * 2 + w_hh.size * 2 + b.size * 4
        + w_out_p.size * 2 + b_out_p.size * 4
        + b_pad * label_pad * 4                       # output
        + seq_len * b_pad * 4 * hidden * 4            # xw f32 scratch
    )
    vmem_limit = int(min(max(2 * vmem_need, 32 << 20), 64 << 20))

    # Single kernel invocation (no grid): everything resident in VMEM, so no
    # double-buffered weight copies and no per-step DMA/grid overhead.
    out = pl.pallas_call(
        kernel,
        out_shape=jax.ShapeDtypeStruct((b_pad, label_pad), jnp.float32),
        in_specs=[pl.BlockSpec(memory_space=pltpu.MemorySpace.VMEM)
                  for _ in range(6)],
        out_specs=pl.BlockSpec(memory_space=pltpu.MemorySpace.VMEM),
        scratch_shapes=[
            pltpu.VMEM((seq_len * b_pad, 4 * hidden), jnp.float32),  # xW for all t
        ],
        compiler_params=pltpu.CompilerParams(vmem_limit_bytes=vmem_limit),
    )(x2d, w_ih, w_hh, b, w_out_p, b_out_p)
    return out[:batch, :label]


def init_params(key, vocab_size, embedding_dim, hidden_dim, label_size):
    """Deterministic synthetic init mirroring PyTorch default init shapes (f32)."""
    k0, k1, k2, k3, k4, k5, k6 = jax.random.split(key, 7)
    s = 1.0 / jnp.sqrt(hidden_dim)
    embedding = jax.random.normal(k0, (vocab_size, embedding_dim), jnp.float32)
    # PyTorch stores w_ih: (4H, E), w_hh: (4H, H); we keep the transposed layout.
    w_ih = jax.random.uniform(k1, (embedding_dim, 4 * hidden_dim), jnp.float32, -s, s)
    w_hh = jax.random.uniform(k2, (hidden_dim, 4 * hidden_dim), jnp.float32, -s, s)
    b_ih = jax.random.uniform(k3, (4 * hidden_dim,), jnp.float32, -s, s)
    b_hh = jax.random.uniform(k4, (4 * hidden_dim,), jnp.float32, -s, s)
    w_out = jax.random.uniform(k5, (hidden_dim, label_size), jnp.float32, -s, s)
    b_out = jax.random.uniform(k6, (label_size,), jnp.float32, -s, s)
    return {
        "embedding": embedding,
        "w_ih": w_ih,
        "w_hh": w_hh,
        "b": (b_ih + b_hh).reshape(1, 4 * hidden_dim),
        "w_out": w_out,
        "b_out": b_out.reshape(1, label_size),
    }


def _reference_forward(sentence, params):
    """Pure-JAX reference using the same bf16-rounded weights (f32 math)."""
    bf = lambda a: a.astype(jnp.bfloat16).astype(jnp.float32)
    x = bf(params["embedding"][sentence])             # (T, B, E)
    w_ih, w_hh, w_out = bf(params["w_ih"]), bf(params["w_hh"]), bf(params["w_out"])
    T, B, _ = x.shape
    H = params["w_hh"].shape[0]
    h = jnp.zeros((B, H), jnp.float32)
    c = jnp.zeros((B, H), jnp.float32)

    def step(carry, x_t):
        h, c = carry
        gates = x_t @ w_ih + h @ w_hh + params["b"]
        i = jax.nn.sigmoid(gates[:, 0 * H:1 * H])
        f = jax.nn.sigmoid(gates[:, 1 * H:2 * H])
        g = jnp.tanh(gates[:, 2 * H:3 * H])
        o = jax.nn.sigmoid(gates[:, 3 * H:4 * H])
        c = f * c + i * g
        h = o * jnp.tanh(c)
        return (h, c), None

    (h, c), _ = jax.lax.scan(step, (h, c), x)
    y = h @ w_out + params["b_out"]
    return jax.nn.log_softmax(y, axis=-1)


if __name__ == "__main__":
    # Small shapes consistent with the module: seq=8, batch=2, embed=16,
    # hidden=32, vocab=50, label_size=3.
    seq_len, batch_size = 8, 2
    embedding_dim, hidden_dim = 16, 32
    vocab_size, label_size = 50, 3

    key = jax.random.PRNGKey(0)
    k_params, k_tokens = jax.random.split(key)
    params = init_params(k_params, vocab_size, embedding_dim, hidden_dim, label_size)
    sentence = jax.random.randint(k_tokens, (seq_len, batch_size), 0, vocab_size,
                                  dtype=jnp.int32)

    log_probs = lstm_sentiment_forward(sentence, params)
    jax.block_until_ready(log_probs)

    ref = _reference_forward(sentence, params)
    assert log_probs.shape == (batch_size, label_size)
    # bf16 MXU inputs with f32 accumulation: loosen tolerance accordingly.
    assert jnp.allclose(log_probs, ref, atol=1e-2, rtol=1e-2), "mismatch vs reference"

    print("KERNEL_OK")
</pallas_src>

<mosaic_0001>
module attributes {stable_mosaic.version = 11 : i64} {
  func.func @_lstm_sentiment_kernel(%arg0: memref<64x16xbf16, #tpu.memory_space<vmem>>, %arg1: memref<16x128xbf16, #tpu.memory_space<vmem>>, %arg2: memref<32x128xbf16, #tpu.memory_space<vmem>>, %arg3: memref<1x128xf32, #tpu.memory_space<vmem>>, %arg4: memref<32x128xbf16, #tpu.memory_space<vmem>>, %arg5: memref<1x128xf32, #tpu.memory_space<vmem>>, %arg6: memref<8x128xf32, #tpu.memory_space<vmem>>, %arg7: memref<64x128xf32, #tpu.memory_space<vmem>>) attributes {dimension_semantics = [], scalar_prefetch = 0 : i64, scratch_operands = 1 : i64, tpu.core_type = #tpu.core_type<tc>} {
    %c0 = arith.constant 0 : index
    %c0_0 = arith.constant 0 : index
    %0 = vector.load %arg0[%c0, %c0_0] : memref<64x16xbf16, #tpu.memory_space<vmem>>, vector<64x16xbf16>
    %c0_1 = arith.constant 0 : index
    %c0_2 = arith.constant 0 : index
    %1 = vector.load %arg1[%c0_1, %c0_2] : memref<16x128xbf16, #tpu.memory_space<vmem>>, vector<16x128xbf16>
    %cst = arith.constant dense<0.000000e+00> : vector<64x128xf32>
    %2 = tpu.matmul %0, %1, %cst {dimension_numbers = #tpu.dot_dimension_numbers<[1], [0], [0], [1], [0, 0, 1, 1], [], []>} : vector<64x16xbf16>, vector<16x128xbf16>, vector<64x128xf32> -> vector<64x128xf32>
    %c0_3 = arith.constant 0 : index
    %c0_4 = arith.constant 0 : index
    %3 = vector.load %arg3[%c0_3, %c0_4] : memref<1x128xf32, #tpu.memory_space<vmem>>, vector<1x128xf32>
    %4 = vector.broadcast %3 : vector<1x128xf32> to vector<64x128xf32>
    %5 = arith.addf %2, %4 : vector<64x128xf32>
    %c0_5 = arith.constant 0 : index
    %c0_6 = arith.constant 0 : index
    %6 = vector.load %arg7[%c0_5, %c0_6] : memref<64x128xf32, #tpu.memory_space<vmem>>, vector<64x128xf32>
    tpu.vector_store %arg7[%c0_5, %c0_6], %5 {strides = array<i32>} : memref<64x128xf32, #tpu.memory_space<vmem>>, vector<64x128xf32>,
    %c0_7 = arith.constant 0 : index
    %c0_8 = arith.constant 0 : index
    %7 = vector.load %arg2[%c0_7, %c0_8] : memref<32x128xbf16, #tpu.memory_space<vmem>>, vector<32x128xbf16>
    %cst_9 = arith.constant 0.000000e+00 : bf16
    %8 = vector.broadcast %cst_9 : bf16 to vector<8x32xbf16>
    %cst_10 = arith.constant 0.000000e+00 : f32
    %9 = vector.broadcast %cst_10 : f32 to vector<8x32xf32>
    %c0_i32 = arith.constant 0 : i32
    %c8_i32 = arith.constant 8 : i32
    %10 = arith.muli %c0_i32, %c8_i32 : i32
    %11 = tpu.assume_multiple %10, 8 : i32
    %12 = arith.index_cast %11 : i32 to index
    %c0_11 = arith.constant 0 : index
    %13 = vector.load %arg7[%12, %c0_11] : memref<64x128xf32, #tpu.memory_space<vmem>>, vector<8x128xf32>
    %cst_12 = arith.constant dense<0.000000e+00> : vector<8x128xf32>
    %14 = tpu.matmul %8, %7, %cst_12 {dimension_numbers = #tpu.dot_dimension_numbers<[1], [0], [0], [1], [0, 0, 1, 1], [], []>} : vector<8x32xbf16>, vector<32x128xbf16>, vector<8x128xf32> -> vector<8x128xf32>
    %15 = arith.addf %13, %14 : vector<8x128xf32>
    %16 = arith.negf %15 : vector<8x128xf32>
    %17 = math.exp %16 : vector<8x128xf32>
    %cst_13 = arith.constant 1.000000e+00 : f32
    %18 = vector.broadcast %cst_13 : f32 to vector<8x128xf32>
    %19 = arith.addf %18, %17 : vector<8x128xf32>
    %20 = arith.divf %18, %19 : vector<8x128xf32>
    %21 = math.tanh %15 : vector<8x128xf32>
    %22 = vector.extract_strided_slice %20 {offsets = [0, 0], sizes = [8, 32], strides = [1, 1]} : vector<8x128xf32> to vector<8x32xf32>
    %23 = vector.extract_strided_slice %20 {offsets = [0, 32], sizes = [8, 32], strides = [1, 1]} : vector<8x128xf32> to vector<8x32xf32>
    %24 = vector.extract_strided_slice %21 {offsets = [0, 64], sizes = [8, 32], strides = [1, 1]} : vector<8x128xf32> to vector<8x32xf32>
    %25 = vector.extract_strided_slice %20 {offsets = [0, 96], sizes = [8, 32], strides = [1, 1]} : vector<8x128xf32> to vector<8x32xf32>
    %26 = arith.mulf %23, %9 : vector<8x32xf32>
    %27 = arith.mulf %22, %24 : vector<8x32xf32>
    %28 = arith.addf %26, %27 : vector<8x32xf32>
    %29 = math.tanh %28 : vector<8x32xf32>
    %30 = arith.mulf %25, %29 : vector<8x32xf32>
    %31 = arith.truncf %30 : vector<8x32xf32> to vector<8x32xbf16>
    %c1_i32 = arith.constant 1 : i32
    %c8_i32_14 = arith.constant 8 : i32
    %32 = arith.muli %c1_i32, %c8_i32_14 : i32
    %33 = tpu.assume_multiple %32, 8 : i32
    %34 = arith.index_cast %33 : i32 to index
    %c0_15 = arith.constant 0 : index
    %35 = vector.load %arg7[%34, %c0_15] : memref<64x128xf32, #tpu.memory_space<vmem>>, vector<8x128xf32>
    %cst_16 = arith.constant dense<0.000000e+00> : vector<8x128xf32>
    %36 = tpu.matmul %31, %7, %cst_16 {dimension_numbers = #tpu.dot_dimension_numbers<[1], [0], [0], [1], [0, 0, 1, 1], [], []>} : vector<8x32xbf16>, vector<32x128xbf16>, vector<8x128xf32> -> vector<8x128xf32>
    %37 = arith.addf %35, %36 : vector<8x128xf32>
    %38 = arith.negf %37 : vector<8x128xf32>
    %39 = math.exp %38 : vector<8x128xf32>
    %cst_17 = arith.constant 1.000000e+00 : f32
    %40 = vector.broadcast %cst_17 : f32 to vector<8x128xf32>
    %41 = arith.addf %40, %39 : vector<8x128xf32>
    %42 = arith.divf %40, %41 : vector<8x128xf32>
    %43 = math.tanh %37 : vector<8x128xf32>
    %44 = vector.extract_strided_slice %42 {offsets = [0, 0], sizes = [8, 32], strides = [1, 1]} : vector<8x128xf32> to vector<8x32xf32>
    %45 = vector.extract_strided_slice %42 {offsets = [0, 32], sizes = [8, 32], strides = [1, 1]} : vector<8x128xf32> to vector<8x32xf32>
    %46 = vector.extract_strided_slice %43 {offsets = [0, 64], sizes = [8, 32], strides = [1, 1]} : vector<8x128xf32> to vector<8x32xf32>
    %47 = vector.extract_strided_slice %42 {offsets = [0, 96], sizes = [8, 32], strides = [1, 1]} : vector<8x128xf32> to vector<8x32xf32>
    %48 = arith.mulf %45, %28 : vector<8x32xf32>
    %49 = arith.mulf %44, %46 : vector<8x32xf32>
    %50 = arith.addf %48, %49 : vector<8x32xf32>
    %51 = math.tanh %50 : vector<8x32xf32>
    %52 = arith.mulf %47, %51 : vector<8x32xf32>
    %53 = arith.truncf %52 : vector<8x32xf32> to vector<8x32xbf16>
    %c2_i32 = arith.constant 2 : i32
    %c8_i32_18 = arith.constant 8 : i32
    %54 = arith.muli %c2_i32, %c8_i32_18 : i32
    %55 = tpu.assume_multiple %54, 8 : i32
    %56 = arith.index_cast %55 : i32 to index
    %c0_19 = arith.constant 0 : index
    %57 = vector.load %arg7[%56, %c0_19] : memref<64x128xf32, #tpu.memory_space<vmem>>, vector<8x128xf32>
    %cst_20 = arith.constant dense<0.000000e+00> : vector<8x128xf32>
    %58 = tpu.matmul %53, %7, %cst_20 {dimension_numbers = #tpu.dot_dimension_numbers<[1], [0], [0], [1], [0, 0, 1, 1], [], []>} : vector<8x32xbf16>, vector<32x128xbf16>, vector<8x128xf32> -> vector<8x128xf32>
    %59 = arith.addf %57, %58 : vector<8x128xf32>
    %60 = arith.negf %59 : vector<8x128xf32>
    %61 = math.exp %60 : vector<8x128xf32>
    %cst_21 = arith.constant 1.000000e+00 : f32
    %62 = vector.broadcast %cst_21 : f32 to vector<8x128xf32>
    %63 = arith.addf %62, %61 : vector<8x128xf32>
    %64 = arith.divf %62, %63 : vector<8x128xf32>
    %65 = math.tanh %59 : vector<8x128xf32>
    %66 = vector.extract_strided_slice %64 {offsets = [0, 0], sizes = [8, 32], strides = [1, 1]} : vector<8x128xf32> to vector<8x32xf32>
    %67 = vector.extract_strided_slice %64 {offsets = [0, 32], sizes = [8, 32], strides = [1, 1]} : vector<8x128xf32> to vector<8x32xf32>
    %68 = vector.extract_strided_slice %65 {offsets = [0, 64], sizes = [8, 32], strides = [1, 1]} : vector<8x128xf32> to vector<8x32xf32>
    %69 = vector.extract_strided_slice %64 {offsets = [0, 96], sizes = [8, 32], strides = [1, 1]} : vector<8x128xf32> to vector<8x32xf32>
    %70 = arith.mulf %67, %50 : vector<8x32xf32>
    %71 = arith.mulf %66, %68 : vector<8x32xf32>
    %72 = arith.addf %70, %71 : vector<8x32xf32>
    %73 = math.tanh %72 : vector<8x32xf32>
    %74 = arith.mulf %69, %73 : vector<8x32xf32>
    %75 = arith.truncf %74 : vector<8x32xf32> to vector<8x32xbf16>
    %c3_i32 = arith.constant 3 : i32
    %c8_i32_22 = arith.constant 8 : i32
    %76 = arith.muli %c3_i32, %c8_i32_22 : i32
    %77 = tpu.assume_multiple %76, 8 : i32
    %78 = arith.index_cast %77 : i32 to index
    %c0_23 = arith.constant 0 : index
    %79 = vector.load %arg7[%78, %c0_23] : memref<64x128xf32, #tpu.memory_space<vmem>>, vector<8x128xf32>
    %cst_24 = arith.constant dense<0.000000e+00> : vector<8x128xf32>
    %80 = tpu.matmul %75, %7, %cst_24 {dimension_numbers = #tpu.dot_dimension_numbers<[1], [0], [0], [1], [0, 0, 1, 1], [], []>} : vector<8x32xbf16>, vector<32x128xbf16>, vector<8x128xf32> -> vector<8x128xf32>
    %81 = arith.addf %79, %80 : vector<8x128xf32>
    %82 = arith.negf %81 : vector<8x128xf32>
    %83 = math.exp %82 : vector<8x128xf32>
    %cst_25 = arith.constant 1.000000e+00 : f32
    %84 = vector.broadcast %cst_25 : f32 to vector<8x128xf32>
    %85 = arith.addf %84, %83 : vector<8x128xf32>
    %86 = arith.divf %84, %85 : vector<8x128xf32>
    %87 = math.tanh %81 : vector<8x128xf32>
    %88 = vector.extract_strided_slice %86 {offsets = [0, 0], sizes = [8, 32], strides = [1, 1]} : vector<8x128xf32> to vector<8x32xf32>
    %89 = vector.extract_strided_slice %86 {offsets = [0, 32], sizes = [8, 32], strides = [1, 1]} : vector<8x128xf32> to vector<8x32xf32>
    %90 = vector.extract_strided_slice %87 {offsets = [0, 64], sizes = [8, 32], strides = [1, 1]} : vector<8x128xf32> to vector<8x32xf32>
    %91 = vector.extract_strided_slice %86 {offsets = [0, 96], sizes = [8, 32], strides = [1, 1]} : vector<8x128xf32> to vector<8x32xf32>
    %92 = arith.mulf %89, %72 : vector<8x32xf32>
    %93 = arith.mulf %88, %90 : vector<8x32xf32>
    %94 = arith.addf %92, %93 : vector<8x32xf32>
    %95 = math.tanh %94 : vector<8x32xf32>
    %96 = arith.mulf %91, %95 : vector<8x32xf32>
    %97 = arith.truncf %96 : vector<8x32xf32> to vector<8x32xbf16>
    %c4_i32 = arith.constant 4 : i32
    %c8_i32_26 = arith.constant 8 : i32
    %98 = arith.muli %c4_i32, %c8_i32_26 : i32
    %99 = tpu.assume_multiple %98, 8 : i32
    %100 = arith.index_cast %99 : i32 to index
    %c0_27 = arith.constant 0 : index
    %101 = vector.load %arg7[%100, %c0_27] : memref<64x128xf32, #tpu.memory_space<vmem>>, vector<8x128xf32>
    %cst_28 = arith.constant dense<0.000000e+00> : vector<8x128xf32>
    %102 = tpu.matmul %97, %7, %cst_28 {dimension_numbers = #tpu.dot_dimension_numbers<[1], [0], [0], [1], [0, 0, 1, 1], [], []>} : vector<8x32xbf16>, vector<32x128xbf16>, vector<8x128xf32> -> vector<8x128xf32>
    %103 = arith.addf %101, %102 : vector<8x128xf32>
    %104 = arith.negf %103 : vector<8x128xf32>
    %105 = math.exp %104 : vector<8x128xf32>
    %cst_29 = arith.constant 1.000000e+00 : f32
    %106 = vector.broadcast %cst_29 : f32 to vector<8x128xf32>
    %107 = arith.addf %106, %105 : vector<8x128xf32>
    %108 = arith.divf %106, %107 : vector<8x128xf32>
    %109 = math.tanh %103 : vector<8x128xf32>
    %110 = vector.extract_strided_slice %108 {offsets = [0, 0], sizes = [8, 32], strides = [1, 1]} : vector<8x128xf32> to vector<8x32xf32>
    %111 = vector.extract_strided_slice %108 {offsets = [0, 32], sizes = [8, 32], strides = [1, 1]} : vector<8x128xf32> to vector<8x32xf32>
    %112 = vector.extract_strided_slice %109 {offsets = [0, 64], sizes = [8, 32], strides = [1, 1]} : vector<8x128xf32> to vector<8x32xf32>
    %113 = vector.extract_strided_slice %108 {offsets = [0, 96], sizes = [8, 32], strides = [1, 1]} : vector<8x128xf32> to vector<8x32xf32>
    %114 = arith.mulf %111, %94 : vector<8x32xf32>
    %115 = arith.mulf %110, %112 : vector<8x32xf32>
    %116 = arith.addf %114, %115 : vector<8x32xf32>
    %117 = math.tanh %116 : vector<8x32xf32>
    %118 = arith.mulf %113, %117 : vector<8x32xf32>
    %119 = arith.truncf %118 : vector<8x32xf32> to vector<8x32xbf16>
    %c5_i32 = arith.constant 5 : i32
    %c8_i32_30 = arith.constant 8 : i32
    %120 = arith.muli %c5_i32, %c8_i32_30 : i32
    %121 = tpu.assume_multiple %120, 8 : i32
    %122 = arith.index_cast %121 : i32 to index
    %c0_31 = arith.constant 0 : index
    %123 = vector.load %arg7[%122, %c0_31] : memref<64x128xf32, #tpu.memory_space<vmem>>, vector<8x128xf32>
    %cst_32 = arith.constant dense<0.000000e+00> : vector<8x128xf32>
    %124 = tpu.matmul %119, %7, %cst_32 {dimension_numbers = #tpu.dot_dimension_numbers<[1], [0], [0], [1], [0, 0, 1, 1], [], []>} : vector<8x32xbf16>, vector<32x128xbf16>, vector<8x128xf32> -> vector<8x128xf32>
    %125 = arith.addf %123, %124 : vector<8x128xf32>
    %126 = arith.negf %125 : vector<8x128xf32>
    %127 = math.exp %126 : vector<8x128xf32>
    %cst_33 = arith.constant 1.000000e+00 : f32
    %128 = vector.broadcast %cst_33 : f32 to vector<8x128xf32>
    %129 = arith.addf %128, %127 : vector<8x128xf32>
    %130 = arith.divf %128, %129 : vector<8x128xf32>
    %131 = math.tanh %125 : vector<8x128xf32>
    %132 = vector.extract_strided_slice %130 {offsets = [0, 0], sizes = [8, 32], strides = [1, 1]} : vector<8x128xf32> to vector<8x32xf32>
    %133 = vector.extract_strided_slice %130 {offsets = [0, 32], sizes = [8, 32], strides = [1, 1]} : vector<8x128xf32> to vector<8x32xf32>
    %134 = vector.extract_strided_slice %131 {offsets = [0, 64], sizes = [8, 32], strides = [1, 1]} : vector<8x128xf32> to vector<8x32xf32>
    %135 = vector.extract_strided_slice %130 {offsets = [0, 96], sizes = [8, 32], strides = [1, 1]} : vector<8x128xf32> to vector<8x32xf32>
    %136 = arith.mulf %133, %116 : vector<8x32xf32>
    %137 = arith.mulf %132, %134 : vector<8x32xf32>
    %138 = arith.addf %136, %137 : vector<8x32xf32>
    %139 = math.tanh %138 : vector<8x32xf32>
    %140 = arith.mulf %135, %139 : vector<8x32xf32>
    %141 = arith.truncf %140 : vector<8x32xf32> to vector<8x32xbf16>
    %c6_i32 = arith.constant 6 : i32
    %c8_i32_34 = arith.constant 8 : i32
    %142 = arith.muli %c6_i32, %c8_i32_34 : i32
    %143 = tpu.assume_multiple %142, 8 : i32
    %144 = arith.index_cast %143 : i32 to index
    %c0_35 = arith.constant 0 : index
    %145 = vector.load %arg7[%144, %c0_35] : memref<64x128xf32, #tpu.memory_space<vmem>>, vector<8x128xf32>
    %cst_36 = arith.constant dense<0.000000e+00> : vector<8x128xf32>
    %146 = tpu.matmul %141, %7, %cst_36 {dimension_numbers = #tpu.dot_dimension_numbers<[1], [0], [0], [1], [0, 0, 1, 1], [], []>} : vector<8x32xbf16>, vector<32x128xbf16>, vector<8x128xf32> -> vector<8x128xf32>
    %147 = arith.addf %145, %146 : vector<8x128xf32>
    %148 = arith.negf %147 : vector<8x128xf32>
    %149 = math.exp %148 : vector<8x128xf32>
    %cst_37 = arith.constant 1.000000e+00 : f32
    %150 = vector.broadcast %cst_37 : f32 to vector<8x128xf32>
    %151 = arith.addf %150, %149 : vector<8x128xf32>
    %152 = arith.divf %150, %151 : vector<8x128xf32>
    %153 = math.tanh %147 : vector<8x128xf32>
    %154 = vector.extract_strided_slice %152 {offsets = [0, 0], sizes = [8, 32], strides = [1, 1]} : vector<8x128xf32> to vector<8x32xf32>
    %155 = vector.extract_strided_slice %152 {offsets = [0, 32], sizes = [8, 32], strides = [1, 1]} : vector<8x128xf32> to vector<8x32xf32>
    %156 = vector.extract_strided_slice %153 {offsets = [0, 64], sizes = [8, 32], strides = [1, 1]} : vector<8x128xf32> to vector<8x32xf32>
    %157 = vector.extract_strided_slice %152 {offsets = [0, 96], sizes = [8, 32], strides = [1, 1]} : vector<8x128xf32> to vector<8x32xf32>
    %158 = arith.mulf %155, %138 : vector<8x32xf32>
    %159 = arith.mulf %154, %156 : vector<8x32xf32>
    %160 = arith.addf %158, %159 : vector<8x32xf32>
    %161 = math.tanh %160 : vector<8x32xf32>
    %162 = arith.mulf %157, %161 : vector<8x32xf32>
    %163 = arith.truncf %162 : vector<8x32xf32> to vector<8x32xbf16>
    %c7_i32 = arith.constant 7 : i32
    %c8_i32_38 = arith.constant 8 : i32
    %164 = arith.muli %c7_i32, %c8_i32_38 : i32
    %165 = tpu.assume_multiple %164, 8 : i32
    %166 = arith.index_cast %165 : i32 to index
    %c0_39 = arith.constant 0 : index
    %167 = vector.load %arg7[%166, %c0_39] : memref<64x128xf32, #tpu.memory_space<vmem>>, vector<8x128xf32>
    %cst_40 = arith.constant dense<0.000000e+00> : vector<8x128xf32>
    %168 = tpu.matmul %163, %7, %cst_40 {dimension_numbers = #tpu.dot_dimension_numbers<[1], [0], [0], [1], [0, 0, 1, 1], [], []>} : vector<8x32xbf16>, vector<32x128xbf16>, vector<8x128xf32> -> vector<8x128xf32>
    %169 = arith.addf %167, %168 : vector<8x128xf32>
    %170 = arith.negf %169 : vector<8x128xf32>
    %171 = math.exp %170 : vector<8x128xf32>
    %cst_41 = arith.constant 1.000000e+00 : f32
    %172 = vector.broadcast %cst_41 : f32 to vector<8x128xf32>
    %173 = arith.addf %172, %171 : vector<8x128xf32>
    %174 = arith.divf %172, %173 : vector<8x128xf32>
    %175 = math.tanh %169 : vector<8x128xf32>
    %176 = vector.extract_strided_slice %174 {offsets = [0, 0], sizes = [8, 32], strides = [1, 1]} : vector<8x128xf32> to vector<8x32xf32>
    %177 = vector.extract_strided_slice %174 {offsets = [0, 32], sizes = [8, 32], strides = [1, 1]} : vector<8x128xf32> to vector<8x32xf32>
    %178 = vector.extract_strided_slice %175 {offsets = [0, 64], sizes = [8, 32], strides = [1, 1]} : vector<8x128xf32> to vector<8x32xf32>
    %179 = vector.extract_strided_slice %174 {offsets = [0, 96], sizes = [8, 32], strides = [1, 1]} : vector<8x128xf32> to vector<8x32xf32>
    %180 = arith.mulf %177, %160 : vector<8x32xf32>
    %181 = arith.mulf %176, %178 : vector<8x32xf32>
    %182 = arith.addf %180, %181 : vector<8x32xf32>
    %183 = math.tanh %182 : vector<8x32xf32>
    %184 = arith.mulf %179, %183 : vector<8x32xf32>
    %185 = arith.truncf %184 : vector<8x32xf32> to vector<8x32xbf16>
    %c8_i32_42 = arith.constant 8 : i32
    %c0_43 = arith.constant 0 : index
    %c0_44 = arith.constant 0 : index
    %186 = vector.load %arg4[%c0_43, %c0_44] : memref<32x128xbf16, #tpu.memory_space<vmem>>, vector<32x128xbf16>
    %cst_45 = arith.constant dense<0.000000e+00> : vector<8x128xf32>
    %187 = tpu.matmul %185, %186, %cst_45 {dimension_numbers = #tpu.dot_dimension_numbers<[1], [0], [0], [1], [0, 0, 1, 1], [], []>} : vector<8x32xbf16>, vector<32x128xbf16>, vector<8x128xf32> -> vector<8x128xf32>
    %c0_46 = arith.constant 0 : index
    %c0_47 = arith.constant 0 : index
    %188 = vector.load %arg5[%c0_46, %c0_47] : memref<1x128xf32, #tpu.memory_space<vmem>>, vector<1x128xf32>
    %189 = vector.broadcast %188 : vector<1x128xf32> to vector<8x128xf32>
    %190 = arith.addf %187, %189 : vector<8x128xf32>
    %cst_48 = arith.constant dense<0xFF800000> : vector<8xf32>
    %191 = vector.multi_reduction <maximumf>, %190, %cst_48 [1] : vector<8x128xf32> to vector<8xf32>
    %192 = vector.shape_cast %191 : vector<8xf32> to vector<8x1xf32>
    %193 = vector.broadcast %192 : vector<8x1xf32> to vector<8x128xf32>
    %194 = arith.subf %190, %193 : vector<8x128xf32>
    %195 = math.exp %194 : vector<8x128xf32>
    %cst_49 = arith.constant dense<0.000000e+00> : vector<8xf32>
    %196 = vector.multi_reduction <add>, %195, %cst_49 [1] : vector<8x128xf32> to vector<8xf32>
    %197 = vector.shape_cast %196 : vector<8xf32> to vector<8x1xf32>
    %198 = math.log %197 : vector<8x1xf32>
    %199 = vector.broadcast %198 : vector<8x1xf32> to vector<8x128xf32>
    %200 = arith.subf %194, %199 : vector<8x128xf32>
    %c0_50 = arith.constant 0 : index
    %c0_51 = arith.constant 0 : index
    %201 = vector.load %arg6[%c0_50, %c0_51] : memref<8x128xf32, #tpu.memory_space<vmem>>, vector<8x128xf32>
    tpu.vector_store %arg6[%c0_50, %c0_51], %200 {strides = array<i32>} : memref<8x128xf32, #tpu.memory_space<vmem>>, vector<8x128xf32>,
    return
  }
}

</mosaic_0001>

<llo_original>
// kernel: tpu_custom_call.1
$region0: #{tpu_custom_call.1}
  #allocation0 [shape = 'u32[]', space=smem, size = 0x4, offset = 0x4, fixed_abs, tag = 'smem constant byte address 0x4 - core index']
  #allocation1 [shape = 'u32[72,128]{1,0:T(1,128)}', space=vmem, size = 0x9000, scoped, tag = 'internal scratch']
  #allocation2 [shape = 'f32[64,128]{1,0:T(8,128)}', space=vmem, size = 0x8000, scoped, tag = 'scratch operand']
  %s0 = inlined_call_operand.vmem [shape: bf16[64,16], index: 0, kind: input, shape index: {}]
  %s1 = inlined_call_operand.vmem [shape: bf16[16,128], index: 1, kind: input, shape index: {}]
  %s2 = inlined_call_operand.vmem [shape: bf16[32,128], index: 2, kind: input, shape index: {}]
  %s3 = inlined_call_operand.vmem [shape: f32[1,128], index: 3, kind: input, shape index: {}]
  %s4 = inlined_call_operand.vmem [shape: bf16[32,128], index: 4, kind: input, shape index: {}]
  %s5 = inlined_call_operand.vmem [shape: f32[1,128], index: 5, kind: input, shape index: {}]
  %s6 = inlined_call_operand.hbm [shape: f32[8,128], index: 6, kind: output, shape index: {}]
  %s7 = sld [smem:[#allocation0]]
  $region34: #{tpu_custom_call.1} parent=0
    _
  %s9 = ssub.s32 1, %s7
  %s10 = scalar_select 0, %s9, %s7
  $region1: #{tpu_custom_call.1} parent=0
    #allocation3 [shape = 'u8[4096]{0}', space=vmem, size = 0x1000, scoped, tag = 'output window, operand 0, single buffered']
    #allocation4 [shape = 's32[1]{0}', space=sflag, size = 0x4, scoped, tag = 'scoped memory for tpu_custom_call.1']
    %11 = vsyncpa [#allocation4], 0
    // Predicated region
    $region2: #{tpu_custom_call.1} parent=1 // pred_check
      _
    $region3: #{tpu_custom_call.1} parent=1 // pred_check_branch
      %13 = sbr.rel (0) target = $region5
    $region4: #{tpu_custom_call.1} parent=1 // pred_region
      _
    $region5: #{tpu_custom_call.1} parent=1 // pred_fallthru
      _
    // Predicated region
    $region6: #{tpu_custom_call.1} parent=1 // pred_check
      _
    $region7: #{tpu_custom_call.1} parent=1 // pred_check_branch
      %15 = sbr.rel (0) target = $region9
    $region8: #{tpu_custom_call.1} parent=1 // pred_region
      _
    $region9: #{tpu_custom_call.1} parent=1 // pred_fallthru
      _
    // Predicated region
    $region10: #{tpu_custom_call.1} parent=1 // pred_check
      _
    $region11: #{tpu_custom_call.1} parent=1 // pred_check_branch
      %17 = sbr.rel (0) target = $region13
    $region12: #{tpu_custom_call.1} parent=1 // pred_region
      _
    $region13: #{tpu_custom_call.1} parent=1 // pred_fallthru
      _
    // Predicated region
    $region14: #{tpu_custom_call.1} parent=1 // pred_check
      _
    $region15: #{tpu_custom_call.1} parent=1 // pred_check_branch
      %19 = sbr.rel (0) target = $region17
    $region16: #{tpu_custom_call.1} parent=1 // pred_region
      _
    $region17: #{tpu_custom_call.1} parent=1 // pred_fallthru
      _
    // Predicated region
    $region18: #{tpu_custom_call.1} parent=1 // pred_check
      _
    $region19: #{tpu_custom_call.1} parent=1 // pred_check_branch
      %21 = sbr.rel (0) target = $region21
    $region20: #{tpu_custom_call.1} parent=1 // pred_region
      _
    $region21: #{tpu_custom_call.1} parent=1 // pred_fallthru
      _
    // Predicated region
    $region22: #{tpu_custom_call.1} parent=1 // pred_check
      _
    $region23: #{tpu_custom_call.1} parent=1 // pred_check_branch
      %23 = sbr.rel (0) target = $region25
    $region24: #{tpu_custom_call.1} parent=1 // pred_region
      _
    $region25: #{tpu_custom_call.1} parent=1 // pred_fallthru
      _
    %v25 = vld [vmem:[%s0] sm:$0xf]
    %v26 = vld [vmem:[%s0 + $0x4] sm:$0xf]
    %v27 = vld [vmem:[%s0 + $0x8] sm:$0xf]
    %v28 = vld [vmem:[%s0 + $0xc] sm:$0xf]
    %v29 = vld [vmem:[%s0 + $0x10] sm:$0xf]
    %v30 = vld [vmem:[%s0 + $0x14] sm:$0xf]
    %v31 = vld [vmem:[%s0 + $0x18] sm:$0xf]
    %v32 = vld [vmem:[%s0 + $0x1c] sm:$0xf]
    %v33 = vld [vmem:[%s1] sm:$0xf]
    %v34 = vld [vmem:[%s1 + $0x4] sm:$0xf]
    %v35 = vld [vmem:[%s3] sm:$0x1]
    %v37 = vperm.slane %v35, 0
    %v47 = vunpack.c.l.b16 %v25
    %v48 = vunpack.c.l.b16 %v26
    %v49 = vunpack.c.l.b16 %v27
    %v50 = vunpack.c.l.b16 %v28
    %v51 = vunpack.c.l.b16 %v29
    %v52 = vunpack.c.l.b16 %v30
    %v53 = vunpack.c.l.b16 %v31
    %v54 = vunpack.c.l.b16 %v32
    %v55 = vpack.c.b16 %v48, %v47
    %v56 = vpack.c.b16 %v50, %v49
    %v57 = vpack.c.b16 %v52, %v51
    %v58 = vpack.c.b16 %v54, %v53
    %v61 = vunpack.c.l.b16 %v33
    %v62 = vunpack.c.l.b16 %v34
    %v63 = vpack.c.b16 %v62, %v61
    %vm65 = vcmask 130048
    %v67 = vsel %vm65, %v55, 0
    %v70 = vsel %vm65, %v56, 0
    %v73 = vsel %vm65, %v57, 0
    %v76 = vsel %vm65, %v58, 0
    %78 = vmatpush.bf16.msra.mxu0 0
    %79 = vmatpush.bf16.msra.mxu0 0
    %80 = vmatpush.bf16.msra.mxu0 0
    %81 = vmatpush.bf16.msra.mxu0 0
    %82 = vmatpush.bf16.msra.mxu0 0
    %83 = vmatpush.bf16.msra.mxu0 0
    %84 = vmatpush.bf16.msra.mxu0 0
    %85 = vmatpush.bf16.msra.mxu0 %v63
    %86 = vmatmul.bf16.gmra.mxu0 %v67
    %v87 = vpop.f32.mrf.mxu0
    %v88 = vadd.f32 %v37, %v87
    %v89 = vpop.f32.mrf.mxu0
    %v90 = vadd.f32 %v37, %v89
    %91 = vmatmul.bf16.gmra.mxu0 %v70
    %v92 = vpop.f32.mrf.mxu0
    %v93 = vadd.f32 %v37, %v92
    %v94 = vpop.f32.mrf.mxu0
    %v95 = vadd.f32 %v37, %v94
    %96 = vmatmul.bf16.gmra.mxu0 %v73
    %v97 = vpop.f32.mrf.mxu0
    %v98 = vadd.f32 %v37, %v97
    %v99 = vpop.f32.mrf.mxu0
    %v100 = vadd.f32 %v37, %v99
    %101 = vmatmul.bf16.gmra.mxu0 %v76
    %v102 = vpop.f32.mrf.mxu0
    %v103 = vadd.f32 %v37, %v102
    %v104 = vpop.f32.mrf.mxu0
    %v105 = vadd.f32 %v37, %v104
    %106 = vdwg.mxu0
    %107 = vst [vmem:[#allocation2] sm:$0xff] %v88
    %108 = vst [vmem:[#allocation2 + $0x8] sm:$0xff] %v90
    %109 = vst [vmem:[#allocation2 + $0x10] sm:$0xff] %v93
    %110 = vst [vmem:[#allocation2 + $0x18] sm:$0xff] %v95
    %111 = vst [vmem:[#allocation2 + $0x20] sm:$0xff] %v98
    %112 = vst [vmem:[#allocation2 + $0x28] sm:$0xff] %v100
    %113 = vst [vmem:[#allocation2 + $0x30] sm:$0xff] %v103
    %114 = vst [vmem:[#allocation2 + $0x38] sm:$0xff] %v105
    %v115 = vld [vmem:[%s2] sm:$0xf]
    %v116 = vld [vmem:[%s2 + $0x4] sm:$0xf]
    %v117 = vld [vmem:[%s2 + $0x8] sm:$0xf]
    %v118 = vld [vmem:[%s2 + $0xc] sm:$0xf]
    %v119 = vld [vmem:[#allocation2] sm:$0xff]
    %v124 = vunpack.c.l.b16 %v115
    %v125 = vunpack.c.l.b16 %v116
    %v126 = vunpack.c.l.b16 %v117
    %v127 = vunpack.c.l.b16 %v118
    %v128 = vpack.c.b16 %v125, %v124
    %v129 = vpack.c.b16 %v127, %v126
    %vm132 = vcmask 261120
    %v134 = vsel %vm132, 0, 0
    %136 = vmatpush.bf16.msra.mxu0 0
    %137 = vmatpush.bf16.msra.mxu0 0
    %138 = vmatpush.bf16.msra.mxu0 0
    %139 = vmatpush.bf16.msra.mxu0 0
    %140 = vmatpush.bf16.msra.mxu0 0
    %141 = vmatpush.bf16.msra.mxu0 0
    %142 = vmatpush.bf16.msra.mxu0 %v129
    %143 = vmatpush.bf16.msra.mxu0 %v128
    %144 = vmatmul.bf16.gmra.mxu0 %v134
    %v145 = vpop.f32.mrf.mxu0
    %v146 = vadd.f32 0.0, %v145
    %v147 = vpop.f32.mrf.mxu0
    %148 = vdwg.mxu0
    %v149 = vadd.f32 %v119, %v146
    %v150 = vxor.u32 %v149, 2147483648
    %v151 = vmul.f32 %v150, 1.442695
    %v152 = vpow.pop %v151
    %v153 = vadd.f32 %v152, 1.0
    %v154 = vrcp.pop %v153
    %v155 = vmul.f32 %v153, %v154
    %v156 = vsub.f32 1.0, %v155
    %v157 = vmul.f32 %v154, %v156
    %v158 = vadd.f32 %v154, %v157
    %vm159 = vweird.f32 %v153
    %vm160 = vweird.f32 %v154
    %vm161 = vmor %vm159, %vm160
    %v162 = vsel %vm161, %v154, %v158
    %v163 = vand.u32 2147483647, %v153
    %vm164 = vcmp.eq.f32.partialorder %v163, 8.507059e+37
    %v165 = vand.u32 %v153, 2147483648
    %v166 = vor.u32 1.1754944e-38, %v165
    %v167 = vsel %vm164, %v166, %v162
    %v168 = vmul.f32 1.0, %v167
    %v169 = vtanh.pop %v149
    %v170 = vmul.f32 %v168, 0.0
    %172 = vrot.lane.b32.xlu0 %v169, 64
    %v173 = vpop.permute.xlu0 %172
    %v175 = vmul.f32 %v168, %v173
    %177 = vrot.lane.b32.xlu0 %v175, 32
    %v178 = vpop.permute.xlu0 %177
    %v180 = vadd.f32 %v170, %v178
    %v181 = vtanh.pop %v180
    %183 = vrot.lane.b32.xlu0 %v181, 64
    %v184 = vpop.permute.xlu0 %183
    %v186 = vmul.f32 %v168, %v184
    %v187 = vpack.c.bf16 %v186, %v186
    %s188 = scalar_lea.vmem [#allocation2], 8
    %v189 = vld [vmem:[%s188] sm:$0xff]
    %191 = vrot.lane.b32.xlu0 %v187, 32
    %v192 = vpop.permute.xlu0 %191
    %v194 = vsel %vm132, %v192, 0
    %196 = vmatpush.bf16.msra.mxu0 0
    %197 = vmatpush.bf16.msra.mxu0 0
    %198 = vmatpush.bf16.msra.mxu0 0
    %199 = vmatpush.bf16.msra.mxu0 0
    %200 = vmatpush.bf16.msra.mxu0 0
    %201 = vmatpush.bf16.msra.mxu0 0
    %202 = vmatpush.bf16.msra.mxu0 %v129
    %203 = vmatpush.bf16.msra.mxu0 %v128
    %204 = vmatmul.bf16.gmra.mxu0 %v194
    %v205 = vpop.f32.mrf.mxu0
    %v206 = vadd.f32 0.0, %v205
    %v207 = vpop.f32.mrf.mxu0
    %208 = vdwg.mxu0
    %v209 = vadd.f32 %v189, %v206
    %v210 = vxor.u32 %v209, 2147483648
    %v211 = vmul.f32 %v210, 1.442695
    %v212 = vpow.pop %v211
    %v213 = vadd.f32 %v212, 1.0
    %v214 = vrcp.pop %v213
    %v215 = vmul.f32 %v213, %v214
    %v216 = vsub.f32 1.0, %v215
    %v217 = vmul.f32 %v214, %v216
    %v218 = vadd.f32 %v214, %v217
    %vm219 = vweird.f32 %v213
    %vm220 = vweird.f32 %v214
    %vm221 = vmor %vm219, %vm220
    %v222 = vsel %vm221, %v214, %v218
    %v223 = vand.u32 2147483647, %v213
    %vm224 = vcmp.eq.f32.partialorder %v223, 8.507059e+37
    %v225 = vand.u32 %v213, 2147483648
    %v226 = vor.u32 1.1754944e-38, %v225
    %v227 = vsel %vm224, %v226, %v222
    %v228 = vmul.f32 1.0, %v227
    %v229 = vtanh.pop %v209
    %v230 = vmul.f32 %v228, %v180
    %232 = vrot.lane.b32.xlu0 %v229, 64
    %v233 = vpop.permute.xlu0 %232
    %v235 = vmul.f32 %v228, %v233
    %237 = vrot.lane.b32.xlu0 %v235, 32
    %v238 = vpop.permute.xlu0 %237
    %v240 = vadd.f32 %v230, %v238
    %v241 = vtanh.pop %v240
    %243 = vrot.lane.b32.xlu0 %v241, 64
    %v244 = vpop.permute.xlu0 %243
    %v246 = vmul.f32 %v228, %v244
    %v247 = vpack.c.bf16 %v246, %v246
    %s248 = scalar_lea.vmem [#allocation2], 16
    %v249 = vld [vmem:[%s248] sm:$0xff]
    %251 = vrot.lane.b32.xlu0 %v247, 32
    %v252 = vpop.permute.xlu0 %251
    %v254 = vsel %vm132, %v252, 0
    %256 = vmatpush.bf16.msra.mxu0 0
    %257 = vmatpush.bf16.msra.mxu0 0
    %258 = vmatpush.bf16.msra.mxu0 0
    %259 = vmatpush.bf16.msra.mxu0 0
    %260 = vmatpush.bf16.msra.mxu0 0
    %261 = vmatpush.bf16.msra.mxu0 0
    %262 = vmatpush.bf16.msra.mxu0 %v129
    %263 = vmatpush.bf16.msra.mxu0 %v128
    %264 = vmatmul.bf16.gmra.mxu0 %v254
    %v265 = vpop.f32.mrf.mxu0
    %v266 = vadd.f32 0.0, %v265
    %v267 = vpop.f32.mrf.mxu0
    %268 = vdwg.mxu0
    %v269 = vadd.f32 %v249, %v266
    %v270 = vxor.u32 %v269, 2147483648
    %v271 = vmul.f32 %v270, 1.442695
    %v272 = vpow.pop %v271
    %v273 = vadd.f32 %v272, 1.0
    %v274 = vrcp.pop %v273
    %v275 = vmul.f32 %v273, %v274
    %v276 = vsub.f32 1.0, %v275
    %v277 = vmul.f32 %v274, %v276
    %v278 = vadd.f32 %v274, %v277
    %vm279 = vweird.f32 %v273
    %vm280 = vweird.f32 %v274
    %vm281 = vmor %vm279, %vm280
    %v282 = vsel %vm281, %v274, %v278
    %v283 = vand.u32 2147483647, %v273
    %vm284 = vcmp.eq.f32.partialorder %v283, 8.507059e+37
    %v285 = vand.u32 %v273, 2147483648
    %v286 = vor.u32 1.1754944e-38, %v285
    %v287 = vsel %vm284, %v286, %v282
    %v288 = vmul.f32 1.0, %v287
    %v289 = vtanh.pop %v269
    %v290 = vmul.f32 %v288, %v240
    %292 = vrot.lane.b32.xlu0 %v289, 64
    %v293 = vpop.permute.xlu0 %292
    %v295 = vmul.f32 %v288, %v293
    %297 = vrot.lane.b32.xlu0 %v295, 32
    %v298 = vpop.permute.xlu0 %297
    %v300 = vadd.f32 %v290, %v298
    %v301 = vtanh.pop %v300
    %303 = vrot.lane.b32.xlu0 %v301, 64
    %v304 = vpop.permute.xlu0 %303
    %v306 = vmul.f32 %v288, %v304
    %v307 = vpack.c.bf16 %v306, %v306
    %s308 = scalar_lea.vmem [#allocation2], 24
    %v309 = vld [vmem:[%s308] sm:$0xff]
    %311 = vrot.lane.b32.xlu0 %v307, 32
    %v312 = vpop.permute.xlu0 %311
    %v314 = vsel %vm132, %v312, 0
    %316 = vmatpush.bf16.msra.mxu0 0
    %317 = vmatpush.bf16.msra.mxu0 0
    %318 = vmatpush.bf16.msra.mxu0 0
    %319 = vmatpush.bf16.msra.mxu0 0
    %320 = vmatpush.bf16.msra.mxu0 0
    %321 = vmatpush.bf16.msra.mxu0 0
    %322 = vmatpush.bf16.msra.mxu0 %v129
    %323 = vmatpush.bf16.msra.mxu0 %v128
    %324 = vmatmul.bf16.gmra.mxu0 %v314
    %v325 = vpop.f32.mrf.mxu0
    %v326 = vadd.f32 0.0, %v325
    %v327 = vpop.f32.mrf.mxu0
    %328 = vdwg.mxu0
    %v329 = vadd.f32 %v309, %v326
    %v330 = vxor.u32 %v329, 2147483648
    %v331 = vmul.f32 %v330, 1.442695
    %v332 = vpow.pop %v331
    %v333 = vadd.f32 %v332, 1.0
    %v334 = vrcp.pop %v333
    %v335 = vmul.f32 %v333, %v334
    %v336 = vsub.f32 1.0, %v335
    %v337 = vmul.f32 %v334, %v336
    %v338 = vadd.f32 %v334, %v337
    %vm339 = vweird.f32 %v333
    %vm340 = vweird.f32 %v334
    %vm341 = vmor %vm339, %vm340
    %v342 = vsel %vm341, %v334, %v338
    %v343 = vand.u32 2147483647, %v333
    %vm344 = vcmp.eq.f32.partialorder %v343, 8.507059e+37
    %v345 = vand.u32 %v333, 2147483648
    %v346 = vor.u32 1.1754944e-38, %v345
    %v347 = vsel %vm344, %v346, %v342
    %v348 = vmul.f32 1.0, %v347
    %v349 = vtanh.pop %v329
    %v350 = vmul.f32 %v348, %v300
    %352 = vrot.lane.b32.xlu0 %v349, 64
    %v353 = vpop.permute.xlu0 %352
    %v355 = vmul.f32 %v348, %v353
    %357 = vrot.lane.b32.xlu0 %v355, 32
    %v358 = vpop.permute.xlu0 %357
    %v360 = vadd.f32 %v350, %v358
    %v361 = vtanh.pop %v360
    %363 = vrot.lane.b32.xlu0 %v361, 64
    %v364 = vpop.permute.xlu0 %363
    %v366 = vmul.f32 %v348, %v364
    %v367 = vpack.c.bf16 %v366, %v366
    %s368 = scalar_lea.vmem [#allocation2], 32
    %v369 = vld [vmem:[%s368] sm:$0xff]
    %371 = vrot.lane.b32.xlu0 %v367, 32
    %v372 = vpop.permute.xlu0 %371
    %v374 = vsel %vm132, %v372, 0
    %376 = vmatpush.bf16.msra.mxu0 0
    %377 = vmatpush.bf16.msra.mxu0 0
    %378 = vmatpush.bf16.msra.mxu0 0
    %379 = vmatpush.bf16.msra.mxu0 0
    %380 = vmatpush.bf16.msra.mxu0 0
    %381 = vmatpush.bf16.msra.mxu0 0
    %382 = vmatpush.bf16.msra.mxu0 %v129
    %383 = vmatpush.bf16.msra.mxu0 %v128
    %384 = vmatmul.bf16.gmra.mxu0 %v374
    %v385 = vpop.f32.mrf.mxu0
    %v386 = vadd.f32 0.0, %v385
    %v387 = vpop.f32.mrf.mxu0
    %388 = vdwg.mxu0
    %v389 = vadd.f32 %v369, %v386
    %v390 = vxor.u32 %v389, 2147483648
    %v391 = vmul.f32 %v390, 1.442695
    %v392 = vpow.pop %v391
    %v393 = vadd.f32 %v392, 1.0
    %v394 = vrcp.pop %v393
    %v395 = vmul.f32 %v393, %v394
    %v396 = vsub.f32 1.0, %v395
    %v397 = vmul.f32 %v394, %v396
    %v398 = vadd.f32 %v394, %v397
    %vm399 = vweird.f32 %v393
    %vm400 = vweird.f32 %v394
    %vm401 = vmor %vm399, %vm400
    %v402 = vsel %vm401, %v394, %v398
    %v403 = vand.u32 2147483647, %v393
    %vm404 = vcmp.eq.f32.partialorder %v403, 8.507059e+37
    %v405 = vand.u32 %v393, 2147483648
    %v406 = vor.u32 1.1754944e-38, %v405
    %v407 = vsel %vm404, %v406, %v402
    %v408 = vmul.f32 1.0, %v407
    %v409 = vtanh.pop %v389
    %v410 = vmul.f32 %v408, %v360
    %412 = vrot.lane.b32.xlu0 %v409, 64
    %v413 = vpop.permute.xlu0 %412
    %v415 = vmul.f32 %v408, %v413
    %417 = vrot.lane.b32.xlu0 %v415, 32
    %v418 = vpop.permute.xlu0 %417
    %v420 = vadd.f32 %v410, %v418
    %v421 = vtanh.pop %v420
    %423 = vrot.lane.b32.xlu0 %v421, 64
    %v424 = vpop.permute.xlu0 %423
    %v426 = vmul.f32 %v408, %v424
    %v427 = vpack.c.bf16 %v426, %v426
    %s428 = scalar_lea.vmem [#allocation2], 40
    %v429 = vld [vmem:[%s428] sm:$0xff]
    %431 = vrot.lane.b32.xlu0 %v427, 32
    %v432 = vpop.permute.xlu0 %431
    %v434 = vsel %vm132, %v432, 0
    %436 = vmatpush.bf16.msra.mxu0 0
    %437 = vmatpush.bf16.msra.mxu0 0
    %438 = vmatpush.bf16.msra.mxu0 0
    %439 = vmatpush.bf16.msra.mxu0 0
    %440 = vmatpush.bf16.msra.mxu0 0
    %441 = vmatpush.bf16.msra.mxu0 0
    %442 = vmatpush.bf16.msra.mxu0 %v129
    %443 = vmatpush.bf16.msra.mxu0 %v128
    %444 = vmatmul.bf16.gmra.mxu0 %v434
    %v445 = vpop.f32.mrf.mxu0
    %v446 = vadd.f32 0.0, %v445
    %v447 = vpop.f32.mrf.mxu0
    %448 = vdwg.mxu0
    %v449 = vadd.f32 %v429, %v446
    %v450 = vxor.u32 %v449, 2147483648
    %v451 = vmul.f32 %v450, 1.442695
    %v452 = vpow.pop %v451
    %v453 = vadd.f32 %v452, 1.0
    %v454 = vrcp.pop %v453
    %v455 = vmul.f32 %v453, %v454
    %v456 = vsub.f32 1.0, %v455
    %v457 = vmul.f32 %v454, %v456
    %v458 = vadd.f32 %v454, %v457
    %vm459 = vweird.f32 %v453
    %vm460 = vweird.f32 %v454
    %vm461 = vmor %vm459, %vm460
    %v462 = vsel %vm461, %v454, %v458
    %v463 = vand.u32 2147483647, %v453
    %vm464 = vcmp.eq.f32.partialorder %v463, 8.507059e+37
    %v465 = vand.u32 %v453, 2147483648
    %v466 = vor.u32 1.1754944e-38, %v465
    %v467 = vsel %vm464, %v466, %v462
    %v468 = vmul.f32 1.0, %v467
    %v469 = vtanh.pop %v449
    %v470 = vmul.f32 %v468, %v420
    %472 = vrot.lane.b32.xlu0 %v469, 64
    %v473 = vpop.permute.xlu0 %472
    %v475 = vmul.f32 %v468, %v473
    %477 = vrot.lane.b32.xlu0 %v475, 32
    %v478 = vpop.permute.xlu0 %477
    %v480 = vadd.f32 %v470, %v478
    %v481 = vtanh.pop %v480
    %483 = vrot.lane.b32.xlu0 %v481, 64
    %v484 = vpop.permute.xlu0 %483
    %v486 = vmul.f32 %v468, %v484
    %v487 = vpack.c.bf16 %v486, %v486
    %s488 = scalar_lea.vmem [#allocation2], 48
    %v489 = vld [vmem:[%s488] sm:$0xff]
    %491 = vrot.lane.b32.xlu0 %v487, 32
    %v492 = vpop.permute.xlu0 %491
    %v494 = vsel %vm132, %v492, 0
    %496 = vmatpush.bf16.msra.mxu0 0
    %497 = vmatpush.bf16.msra.mxu0 0
    %498 = vmatpush.bf16.msra.mxu0 0
    %499 = vmatpush.bf16.msra.mxu0 0
    %500 = vmatpush.bf16.msra.mxu0 0
    %501 = vmatpush.bf16.msra.mxu0 0
    %502 = vmatpush.bf16.msra.mxu0 %v129
    %503 = vmatpush.bf16.msra.mxu0 %v128
    %504 = vmatmul.bf16.gmra.mxu0 %v494
    %v505 = vpop.f32.mrf.mxu0
    %v506 = vadd.f32 0.0, %v505
    %v507 = vpop.f32.mrf.mxu0
    %508 = vdwg.mxu0
    %v509 = vadd.f32 %v489, %v506
    %v510 = vxor.u32 %v509, 2147483648
    %v511 = vmul.f32 %v510, 1.442695
    %v512 = vpow.pop %v511
    %v513 = vadd.f32 %v512, 1.0
    %v514 = vrcp.pop %v513
    %v515 = vmul.f32 %v513, %v514
    %v516 = vsub.f32 1.0, %v515
    %v517 = vmul.f32 %v514, %v516
    %v518 = vadd.f32 %v514, %v517
    %vm519 = vweird.f32 %v513
    %vm520 = vweird.f32 %v514
    %vm521 = vmor %vm519, %vm520
    %v522 = vsel %vm521, %v514, %v518
    %v523 = vand.u32 2147483647, %v513
    %vm524 = vcmp.eq.f32.partialorder %v523, 8.507059e+37
    %v525 = vand.u32 %v513, 2147483648
    %v526 = vor.u32 1.1754944e-38, %v525
    %v527 = vsel %vm524, %v526, %v522
    %v528 = vmul.f32 1.0, %v527
    %v529 = vtanh.pop %v509
    %v530 = vmul.f32 %v528, %v480
    %532 = vrot.lane.b32.xlu0 %v529, 64
    %v533 = vpop.permute.xlu0 %532
    %v535 = vmul.f32 %v528, %v533
    %537 = vrot.lane.b32.xlu0 %v535, 32
    %v538 = vpop.permute.xlu0 %537
    %v540 = vadd.f32 %v530, %v538
    %v541 = vtanh.pop %v540
    %543 = vrot.lane.b32.xlu0 %v541, 64
    %v544 = vpop.permute.xlu0 %543
    %v546 = vmul.f32 %v528, %v544
    %v547 = vpack.c.bf16 %v546, %v546
    %s548 = scalar_lea.vmem [#allocation2], 56
    %v549 = vld [vmem:[%s548] sm:$0xff]
    %551 = vrot.lane.b32.xlu0 %v547, 32
    %v552 = vpop.permute.xlu0 %551
    %v554 = vsel %vm132, %v552, 0
    %556 = vmatpush.bf16.msra.mxu0 0
    %557 = vmatpush.bf16.msra.mxu0 0
    %558 = vmatpush.bf16.msra.mxu0 0
    %559 = vmatpush.bf16.msra.mxu0 0
    %560 = vmatpush.bf16.msra.mxu0 0
    %561 = vmatpush.bf16.msra.mxu0 0
    %562 = vmatpush.bf16.msra.mxu0 %v129
    %563 = vmatpush.bf16.msra.mxu0 %v128
    %564 = vmatmul.bf16.gmra.mxu0 %v554
    %v565 = vpop.f32.mrf.mxu0
    %v566 = vadd.f32 0.0, %v565
    %v567 = vpop.f32.mrf.mxu0
    %568 = vdwg.mxu0
    %v569 = vadd.f32 %v549, %v566
    %v570 = vxor.u32 %v569, 2147483648
    %v571 = vmul.f32 %v570, 1.442695
    %v572 = vpow.pop %v571
    %v573 = vadd.f32 %v572, 1.0
    %v574 = vrcp.pop %v573
    %v575 = vmul.f32 %v573, %v574
    %v576 = vsub.f32 1.0, %v575
    %v577 = vmul.f32 %v574, %v576
    %v578 = vadd.f32 %v574, %v577
    %vm579 = vweird.f32 %v573
    %vm580 = vweird.f32 %v574
    %vm581 = vmor %vm579, %vm580
    %v582 = vsel %vm581, %v574, %v578
    %v583 = vand.u32 2147483647, %v573
    %vm584 = vcmp.eq.f32.partialorder %v583, 8.507059e+37
    %v585 = vand.u32 %v573, 2147483648
    %v586 = vor.u32 1.1754944e-38, %v585
    %v587 = vsel %vm584, %v586, %v582
    %v588 = vmul.f32 1.0, %v587
    %v589 = vtanh.pop %v569
    %v590 = vmul.f32 %v588, %v540
    %592 = vrot.lane.b32.xlu0 %v589, 64
    %v593 = vpop.permute.xlu0 %592
    %v595 = vmul.f32 %v588, %v593
    %597 = vrot.lane.b32.xlu0 %v595, 32
    %v598 = vpop.permute.xlu0 %597
    %v600 = vadd.f32 %v590, %v598
    %v601 = vtanh.pop %v600
    %603 = vrot.lane.b32.xlu0 %v601, 64
    %v604 = vpop.permute.xlu0 %603
    %v606 = vmul.f32 %v588, %v604
    %v607 = vpack.c.bf16 %v606, %v606
    %v608 = vld [vmem:[%s4] sm:$0xf]
    %v609 = vld [vmem:[%s4 + $0x4] sm:$0xf]
    %v610 = vld [vmem:[%s4 + $0x8] sm:$0xf]
    %v611 = vld [vmem:[%s4 + $0xc] sm:$0xf]
    %v612 = vld [vmem:[%s5] sm:$0x1]
    %v614 = vperm.slane %v612, 0
    %617 = vrot.lane.b32.xlu0 %v607, 32
    %v618 = vpop.permute.xlu0 %617
    %v623 = vunpack.c.l.b16 %v608
    %v624 = vunpack.c.l.b16 %v609
    %v625 = vunpack.c.l.b16 %v610
    %v626 = vunpack.c.l.b16 %v611
    %v627 = vpack.c.b16 %v624, %v623
    %v628 = vpack.c.b16 %v626, %v625
    %v632 = vsel %vm132, %v618, 0
    %634 = vmatpush.bf16.msra.mxu0 0
    %635 = vmatpush.bf16.msra.mxu0 0
    %636 = vmatpush.bf16.msra.mxu0 0
    %637 = vmatpush.bf16.msra.mxu0 0
    %638 = vmatpush.bf16.msra.mxu0 0
    %639 = vmatpush.bf16.msra.mxu0 0
    %640 = vmatpush.bf16.msra.mxu0 %v628
    %641 = vmatpush.bf16.msra.mxu0 %v627
    %642 = vmatmul.bf16.gmra.mxu0 %v632
    %v643 = vpop.f32.mrf.mxu0
    %v644 = vadd.f32 %v614, %v643
    %v645 = vpop.f32.mrf.mxu0
    %646 = vdwg.mxu0
    %647 = vmax.xlane.f32.xlu0 %v644
    %v648 = vpop.xlane.xlu0 %647
    %v649 = vsub.f32 %v644, %v648
    %v650 = vmul.f32 %v649, 1.442695
    %v651 = vpow.pop %v650
    %652 = vadd.xlane.f32.xlu0 %v651
    %v653 = vpop.xlane.xlu0 %652
    %v654 = vlog2.pop %v653
    %v655 = vmul.f32 %v654, 0.6931472
    %v656 = vsub.f32 %v649, %v655
    %657 = vst [vmem:[#allocation3] sm:$0xff] %v656
    // Predicated region
    $region26: #{tpu_custom_call.1} parent=1 // pred_check
      _
    $region27: #{tpu_custom_call.1} parent=1 // pred_check_branch
      %659 = sbr.rel (0) target = $region29
    $region28: #{tpu_custom_call.1} parent=1 // pred_region
      %661 = vsyncadd [#allocation4], 0
      %s663 = sshll.u32 [#allocation3], 4
      %s664 = int_to_ptr.vmem [resolvable:$true] %s663
      %s665 = sshll.u32 %s6, 4
      %s666 = int_to_ptr.hbm [resolvable:$true] %s665
      %668 = dma.vmem_to_hbm [thread:$0]  %s664, 128, %s666, [#allocation4]
    $region29: #{tpu_custom_call.1} parent=1 // pred_fallthru
      _
    // Predicated region
    $region30: #{tpu_custom_call.1} parent=1 // pred_check
      _
    $region31: #{tpu_custom_call.1} parent=1 // pred_check_branch
      %670 = sbr.rel (0) target = $region33
    $region32: #{tpu_custom_call.1} parent=1 // pred_region
      %672 = dma.done [#allocation4], 128
    $region33: #{tpu_custom_call.1} parent=1 // pred_fallthru
      _
    %673 = vsyncpa [#allocation4], 1

</llo_original>
